<compile_context>
chip_gen: v6e
topology: v6e:2x2x1
jax: 0.10.0
libtpu: 0.0.40
codegen_flags: <defaults>
</compile_context>

<pallas_src>
import functools

import jax
import jax.numpy as jnp
from jax.experimental import pallas as pl
from jax.experimental.pallas import tpu as pltpu

_EPS = 1e-5
_MIB = 1024 * 1024


# --------------------------------------------------------------------------- #
# Small helpers
# --------------------------------------------------------------------------- #
def _round_up(a: int, b: int) -> int:
    return (a + b - 1) // b * b


def _sublane(dtype) -> int:
    # Min second-to-last tile dim for dense sublane packing: 8 (f32), 16
    # (bf16), 32 (int8/fp8).
    return max(8, 32 // jnp.dtype(dtype).itemsize)


def _device_kind() -> str:
    try:
        return jax.devices()[0].device_kind.lower()
    except Exception:
        return ""


def _vmem_capacity_bytes() -> int:
    try:
        return int(pltpu.get_tpu_info().vmem_capacity_bytes)
    except Exception:
        return 64 * _MIB  # conservative fallback: v7x per-TensorCore VMEM


# --------------------------------------------------------------------------- #
# Kernels
# --------------------------------------------------------------------------- #
def _epilogue(h, p_ref, o_ref, n_valid: int):
    """bias + ReLU + (inference) dropout + LayerNorm on an f32 (TM, N_pad) tile."""
    bias = p_ref[0:1, :]
    gamma = p_ref[1:2, :]
    beta = p_ref[2:3, :]

    h = jnp.maximum(h + bias, 0.0)          # Linear bias + ReLU
    # Dropout: identity at inference time.

    # Single-pass LayerNorm statistics.  Padded W columns / bias lanes are 0,
    # so padded lanes of h are exactly 0 after ReLU and do not perturb either
    # sum; divide by the number of *valid* lanes.
    inv_n = jnp.float32(1.0 / n_valid)
    mean = jnp.sum(h, axis=-1, keepdims=True) * inv_n
    var = jnp.sum(h * h, axis=-1, keepdims=True) * inv_n - mean * mean
    var = jnp.maximum(var, 0.0)             # guard tiny negative from cancellation
    normed = (h - mean) * jax.lax.rsqrt(var + _EPS)

    # gamma is zero-padded, so padded output lanes store 0 (sliced off later).
    o_ref[...] = (normed * gamma + beta).astype(o_ref.dtype)


def _inr_kernel(x_ref, w_ref, p_ref, o_ref, *, n_valid: int):
    # x_ref: (TM, K)   w_ref: (K, Np)   p_ref: (3, Np)   o_ref: (TM, Np)
    h = jnp.dot(x_ref[...], w_ref[...], preferred_element_type=jnp.float32)
    _epilogue(h, p_ref, o_ref, n_valid)


def _inr_kernel_ktiled(x_ref, w_ref, p_ref, o_ref, acc_ref, *, n_valid: int):
    # Same, but K is tiled over an "arbitrary" grid axis with an f32 accumulator.
    k = pl.program_id(1)

    @pl.when(k == 0)
    def _():
        acc_ref[...] = jnp.zeros_like(acc_ref)

    acc_ref[...] += jnp.dot(x_ref[...], w_ref[...],
                            preferred_element_type=jnp.float32)

    @pl.when(k == pl.num_programs(1) - 1)
    def _():
        _epilogue(acc_ref[...], p_ref, o_ref, n_valid)


# --------------------------------------------------------------------------- #
# Wrappers
# --------------------------------------------------------------------------- #
def prepare_inr_params(weight, bias, gamma, beta):
    """One-time parameter prep (hoist out of the per-call path).

    weight: (N, K) torch-style; bias/gamma/beta: (N,).
    Returns (w_padded (K, N_pad), params (3, N_pad) f32 [bias;gamma;beta], N).
    """
    N, K = weight.shape
    kind = _device_kind()
    # v6e/v7x MXUs are 2x256^2: 256-aligned widths fill the systolic array.
    # v5e (4x128^2) is already saturated at 128; small N stays at 128 to keep
    # padding (and padded-lane bandwidth) low.
    lane = 256 if (N > 128 and ("v6" in kind or "v7" in kind)) else 128
    n_pad = _round_up(N, lane)

    w_p = jnp.zeros((K, n_pad), weight.dtype).at[:, :N].set(weight.T)
    params = jnp.zeros((3, n_pad), jnp.float32)
    params = params.at[0, :N].set(bias.astype(jnp.float32))
    params = params.at[1, :N].set(gamma.astype(jnp.float32))
    params = params.at[2, :N].set(beta.astype(jnp.float32))
    return w_p, params, int(N)


def inr_layer_apply(x, w_p, params, n_valid, *, tile_m: int = 512,
                    out_dtype=None):
    """Fused Linear + ReLU + (inference) Dropout + LayerNorm.

    x: (..., K).  w_p: (K, N_pad) pre-transposed/zero-padded weight.
    params: (3, N_pad) f32 slab [bias; gamma; beta].  Returns (..., n_valid).
    """
    K = x.shape[-1]
    k_w, n_pad = w_p.shape
    assert K == k_w, "x feature dim must match prepared weight"
    lead = x.shape[:-1]
    out_dtype = x.dtype if out_dtype is None else out_dtype

    x2 = x.reshape(-1, K)
    M = x2.shape[0]

    x_isz = jnp.dtype(x.dtype).itemsize
    w_isz = jnp.dtype(w_p.dtype).itemsize
    o_isz = jnp.dtype(out_dtype).itemsize

    # ---- generation-aware VMEM budgeting -----------------------------------
    capacity = _vmem_capacity_bytes()
    budget = (capacity * 11) // 20            # ~55% of per-core VMEM
    kind = _device_kind()
    is_v7x = "v7" in kind

    w_bytes_full = K * n_pad * w_isz
    p_bytes = 3 * n_pad * 4
    w_budget = (budget * 2) // 5              # weight buffers capped at ~40%

    # K tiling only when the resident weight would blow the budget and K is
    # 128-aligned (so no ragged K tile ever reads garbage lanes of x).
    tile_k = K
    if w_bytes_full > w_budget and K % 128 == 0:
        units = K // 128
        tile_k = 128
        for d in range(units, 0, -1):
            if units % d == 0 and 2 * 128 * d * n_pad * w_isz <= w_budget:
                tile_k = 128 * d
                break
    num_k = pl.cdiv(K, tile_k)

    if num_k == 1:
        # Resident, constant-index weight/params: single-buffer them once they
        # are big enough to matter (a second buffer is pure VMEM waste).
        single_buf = 2 * w_bytes_full > 8 * _MIB
        const_kw = dict(pipeline_mode=pl.Buffered(1)) if single_buf else {}
        const_bytes = (1 if single_buf else 2) * (w_bytes_full + p_bytes)
        acc_row_bytes = 0
    else:
        # Streamed weight tiles keep the default double buffering.
        const_kw = {}
        const_bytes = 2 * (tile_k * n_pad * w_isz + p_bytes)
        acc_row_bytes = n_pad * 4

    # Row tiling: big tiles (>=512 rows ~85% of HBM roofline on v6e), rounded
    # to the dtype sublane packing, shrunk only if VMEM-bound.
    sub = max(_sublane(x.dtype), _sublane(out_dtype))
    tile_m = min(max(tile_m, sub), _round_up(M, sub))
    tile_m = _round_up(tile_m, sub)

    def _vmem_use(tm):
        return (const_bytes + 2 * tm * tile_k * x_isz
                + 2 * tm * n_pad * o_isz + tm * acc_row_bytes)

    while tile_m > sub and _vmem_use(tile_m) > budget:
        tile_m = max(sub, _round_up(tile_m // 2, sub))

    # Megacore: only v7x has 2 TensorCores; split the row grid only there and
    # only when M is large enough that both halves stay big.
    if is_v7x and pl.cdiv(M, tile_m) < 2 and M >= 512:
        tile_m = _round_up(pl.cdiv(M, 2), sub)

    num_m = pl.cdiv(M, tile_m)
    vmem_limit = int(min(max(capacity - 2 * _MIB, 32 * _MIB),
                         max(_vmem_use(tile_m) + 4 * _MIB, 32 * _MIB)))

    cost = pl.CostEstimate(
        flops=2 * M * K * n_pad,
        transcendentals=M,                    # one rsqrt per row
        bytes_accessed=(M * K * x_isz + K * n_pad * w_isz + p_bytes
                        + M * n_pad * o_isz))

    if num_k == 1:
        grid = (num_m,)
        in_specs = [
            pl.BlockSpec((tile_m, K), lambda i: (i, 0)),               # x rows
            pl.BlockSpec((K, n_pad), lambda i: (0, 0), **const_kw),    # W^T
            pl.BlockSpec((3, n_pad), lambda i: (0, 0), **const_kw),    # b/g/beta
        ]
        out_specs = pl.BlockSpec((tile_m, n_pad), lambda i: (i, 0))
        scratch_shapes = []
        kernel = functools.partial(_inr_kernel, n_valid=n_valid)
        dims = ("parallel",)
    else:
        grid = (num_m, num_k)
        in_specs = [
            pl.BlockSpec((tile_m, tile_k), lambda i, k: (i, k)),
            pl.BlockSpec((tile_k, n_pad), lambda i, k: (k, 0)),
            pl.BlockSpec((3, n_pad), lambda i, k: (0, 0)),
        ]
        out_specs = pl.BlockSpec((tile_m, n_pad), lambda i, k: (i, 0))
        scratch_shapes = [pltpu.VMEM((tile_m, n_pad), jnp.float32)]
        kernel = functools.partial(_inr_kernel_ktiled, n_valid=n_valid)
        dims = ("parallel", "arbitrary")

    out2 = pl.pallas_call(
        kernel,
        out_shape=jax.ShapeDtypeStruct((M, n_pad), out_dtype),
        grid_spec=pltpu.PrefetchScalarGridSpec(
            num_scalar_prefetch=0,
            grid=grid,
            in_specs=in_specs,
            out_specs=out_specs,
            scratch_shapes=scratch_shapes,
        ),
        compiler_params=pltpu.CompilerParams(
            dimension_semantics=dims,
            vmem_limit_bytes=vmem_limit),
        cost_estimate=cost,
    )(x2, w_p, params)

    if n_pad != n_valid:
        out2 = out2[:, :n_valid]
    return out2.reshape(*lead, n_valid)


def inr_layer(x, weight, bias, gamma, beta, **kwargs):
    """Convenience one-shot wrapper (prep + apply).  Prefer prepare_inr_params
    once + inr_layer_apply per step when calling repeatedly."""
    w_p, params, n_valid = prepare_inr_params(weight, bias, gamma, beta)
    return inr_layer_apply(x, w_p, params, n_valid, **kwargs)


# --------------------------------------------------------------------------- #
# Reference & demo
# --------------------------------------------------------------------------- #
def _reference(x, weight, bias, gamma, beta):
    h = jnp.maximum(x @ weight.T + bias, 0.0)
    mean = jnp.mean(h, axis=-1, keepdims=True)
    var = jnp.mean((h - mean) ** 2, axis=-1, keepdims=True)
    return (h - mean) * jax.lax.rsqrt(var + _EPS) * gamma + beta


if __name__ == "__main__":
    key = jax.random.PRNGKey(0)
    kx, kw = jax.random.split(key)

    batch, seq = 2, 8
    input_size, output_size = 32, 64

    x = jax.random.normal(kx, (batch, seq, input_size), dtype=jnp.float32)

    # Deterministic parameter init mirroring init_weights():
    #   xavier_uniform_ for linear.weight, zeros for bias,
    #   LayerNorm defaults: gamma=1, beta=0.
    limit = (6.0 / (input_size + output_size)) ** 0.5
    weight = jax.random.uniform(
        kw, (output_size, input_size), minval=-limit, maxval=limit,
        dtype=jnp.float32)
    bias = jnp.zeros((output_size,), jnp.float32)
    gamma = jnp.ones((output_size,), jnp.float32)
    beta = jnp.zeros((output_size,), jnp.float32)

    # One-time parameter prep (hoisted out of the per-call path), then apply.
    w_p, params, n_valid = prepare_inr_params(weight, bias, gamma, beta)
    out = inr_layer_apply(x, w_p, params, n_valid)
    out = jax.block_until_ready(out)

    ref = _reference(x, weight, bias, gamma, beta)
    assert out.shape == (batch, seq, output_size)
    assert jnp.allclose(out, ref, atol=1e-5, rtol=1e-5), \
        float(jnp.max(jnp.abs(out - ref)))

    print("KERNEL_OK")
</pallas_src>

<mosaic_0001>
module attributes {stable_mosaic.version = 11 : i64} {
  func.func @_inr_kernel(%arg0: i32, %arg1: memref<16x32xf32, #tpu.memory_space<vmem>>, %arg2: memref<32x128xf32, #tpu.memory_space<vmem>>, %arg3: memref<3x128xf32, #tpu.memory_space<vmem>>, %arg4: memref<16x128xf32, #tpu.memory_space<vmem>>) attributes {dimension_semantics = [#tpu.dimension_semantics<parallel>], iteration_bounds = array<i64: 1>, scalar_prefetch = 0 : i64, scratch_operands = 0 : i64, tpu.core_type = #tpu.core_type<tc>, window_params = [{transform_indices = @transform_0, window_bounds = array<i64: 16, 32>}, {pipeline_mode = #tpu.pipeline_mode<synchronous>, transform_indices = @transform_1, window_bounds = array<i64: 32, 128>}, {pipeline_mode = #tpu.pipeline_mode<synchronous>, transform_indices = @transform_2, window_bounds = array<i64: 3, 128>}, {transform_indices = @transform_3, window_bounds = array<i64: 16, 128>}]} {
    %c0 = arith.constant 0 : index
    %c0_0 = arith.constant 0 : index
    %0 = vector.load %arg1[%c0, %c0_0] : memref<16x32xf32, #tpu.memory_space<vmem>>, vector<16x32xf32>
    %c0_1 = arith.constant 0 : index
    %c0_2 = arith.constant 0 : index
    %1 = vector.load %arg2[%c0_1, %c0_2] : memref<32x128xf32, #tpu.memory_space<vmem>>, vector<32x128xf32>
    %cst = arith.constant dense<0.000000e+00> : vector<16x128xf32>
    %2 = tpu.matmul %0, %1, %cst {dimension_numbers = #tpu.dot_dimension_numbers<[1], [0], [0], [1], [0, 0, 1, 1], [], []>} : vector<16x32xf32>, vector<32x128xf32>, vector<16x128xf32> -> vector<16x128xf32>
    %c0_3 = arith.constant 0 : index
    %c0_4 = arith.constant 0 : index
    %3 = vector.load %arg3[%c0_3, %c0_4] : memref<3x128xf32, #tpu.memory_space<vmem>>, vector<1x128xf32>
    %c1 = arith.constant 1 : index
    %c0_5 = arith.constant 0 : index
    %4 = vector.load %arg3[%c1, %c0_5] : memref<3x128xf32, #tpu.memory_space<vmem>>, vector<1x128xf32>
    %c2 = arith.constant 2 : index
    %c0_6 = arith.constant 0 : index
    %5 = vector.load %arg3[%c2, %c0_6] : memref<3x128xf32, #tpu.memory_space<vmem>>, vector<1x128xf32>
    %6 = vector.broadcast %3 : vector<1x128xf32> to vector<16x128xf32>
    %7 = arith.addf %2, %6 : vector<16x128xf32>
    %cst_7 = arith.constant 0.000000e+00 : f32
    %8 = vector.broadcast %cst_7 : f32 to vector<16x128xf32>
    %9 = arith.maximumf %7, %8 : vector<16x128xf32>
    %cst_8 = arith.constant dense<0.000000e+00> : vector<16xf32>
    %10 = vector.multi_reduction <add>, %9, %cst_8 [1] : vector<16x128xf32> to vector<16xf32>
    %11 = vector.shape_cast %10 : vector<16xf32> to vector<16x1xf32>
    %cst_9 = arith.constant 1.562500e-02 : f32
    %12 = vector.broadcast %cst_9 : f32 to vector<16x1xf32>
    %13 = arith.mulf %11, %12 : vector<16x1xf32>
    %14 = arith.mulf %9, %9 : vector<16x128xf32>
    %cst_10 = arith.constant dense<0.000000e+00> : vector<16xf32>
    %15 = vector.multi_reduction <add>, %14, %cst_10 [1] : vector<16x128xf32> to vector<16xf32>
    %16 = vector.shape_cast %15 : vector<16xf32> to vector<16x1xf32>
    %cst_11 = arith.constant 1.562500e-02 : f32
    %17 = vector.broadcast %cst_11 : f32 to vector<16x1xf32>
    %18 = arith.mulf %16, %17 : vector<16x1xf32>
    %19 = arith.mulf %13, %13 : vector<16x1xf32>
    %20 = arith.subf %18, %19 : vector<16x1xf32>
    %cst_12 = arith.constant 0.000000e+00 : f32
    %21 = vector.broadcast %cst_12 : f32 to vector<16x1xf32>
    %22 = arith.maximumf %20, %21 : vector<16x1xf32>
    %23 = vector.broadcast %13 : vector<16x1xf32> to vector<16x128xf32>
    %24 = arith.subf %9, %23 : vector<16x128xf32>
    %cst_13 = arith.constant 9.99999974E-6 : f32
    %25 = vector.broadcast %cst_13 : f32 to vector<16x1xf32>
    %26 = arith.addf %22, %25 : vector<16x1xf32>
    %27 = math.rsqrt %26 : vector<16x1xf32>
    %28 = vector.broadcast %27 : vector<16x1xf32> to vector<16x128xf32>
    %29 = arith.mulf %24, %28 : vector<16x128xf32>
    %30 = vector.broadcast %4 : vector<1x128xf32> to vector<16x128xf32>
    %31 = arith.mulf %29, %30 : vector<16x128xf32>
    %32 = vector.broadcast %5 : vector<1x128xf32> to vector<16x128xf32>
    %33 = arith.addf %31, %32 : vector<16x128xf32>
    %c0_14 = arith.constant 0 : index
    %c0_15 = arith.constant 0 : index
    %34 = vector.load %arg4[%c0_14, %c0_15] : memref<16x128xf32, #tpu.memory_space<vmem>>, vector<16x128xf32>
    tpu.vector_store %arg4[%c0_14, %c0_15], %33 {strides = array<i32>} : memref<16x128xf32, #tpu.memory_space<vmem>>, vector<16x128xf32>,
    return
  }
  func.func @transform_0(%arg0: i32) -> (i32, i32) {
    %c0_i32 = arith.constant 0 : i32
    %c0_i32_0 = arith.constant 0 : i32
    return %arg0, %c0_i32 : i32, i32
  }
  func.func @transform_1(%arg0: i32) -> (i32, i32) {
    %c0_i32 = arith.constant 0 : i32
    %c0_i32_0 = arith.constant 0 : i32
    %c0_i32_1 = arith.constant 0 : i32
    return %c0_i32, %c0_i32_0 : i32, i32
  }
  func.func @transform_2(%arg0: i32) -> (i32, i32) {
    %c0_i32 = arith.constant 0 : i32
    %c0_i32_0 = arith.constant 0 : i32
    %c0_i32_1 = arith.constant 0 : i32
    return %c0_i32, %c0_i32_0 : i32, i32
  }
  func.func @transform_3(%arg0: i32) -> (i32, i32) {
    %c0_i32 = arith.constant 0 : i32
    %c0_i32_0 = arith.constant 0 : i32
    return %arg0, %c0_i32 : i32, i32
  }
}

</mosaic_0001>

<llo_original>
// kernel: tpu_custom_call.1
$region0: #{tpu_custom_call.1}
  #allocation0 [shape = 'u32[]', space=smem, size = 0x4, offset = 0x4, fixed_abs, tag = 'smem constant byte address 0x4 - core index']
  #allocation1 [shape = 'u32[144,128]{1,0:T(1,128)}', space=vmem, size = 0x12000, scoped, tag = 'internal scratch']
  %s0 = inlined_call_operand.hbm [shape: f32[16,32], index: 0, kind: input, shape index: {}]
  %s1 = inlined_call_operand.hbm [shape: f32[32,128], index: 1, kind: input, shape index: {}]
  %s2 = inlined_call_operand.hbm [shape: f32[3,128], index: 2, kind: input, shape index: {}]
  %s3 = inlined_call_operand.hbm [shape: f32[16,128], index: 3, kind: output, shape index: {}]
  %s4 = sld [smem:[#allocation0]]
  $region34: #{tpu_custom_call.1} parent=0
    _
  %s6 = ssub.s32 1, %s4
  %s7 = scalar_select 0, %s6, %s4
  $region1: #{tpu_custom_call.1} parent=0
    #allocation2 [shape = 'u8[8192]{0}', space=vmem, size = 0x2000, scoped, tag = 'input window, operand 0, single buffered']
    #allocation3 [shape = 's32[1]{0}', space=sflag, size = 0x4, scoped, tag = 'scoped memory for tpu_custom_call.1']
    #allocation4 [shape = 's32[1]{0}', space=sflag, size = 0x4, scoped, tag = 'scoped memory for tpu_custom_call.1']
    #allocation5 [shape = 'u8[16384]{0}', space=vmem, size = 0x4000, scoped, tag = 'input window, operand 1, single buffered']
    #allocation6 [shape = 's32[1]{0}', space=sflag, size = 0x4, scoped, tag = 'scoped memory for tpu_custom_call.1']
    #allocation7 [shape = 'u8[2048]{0}', space=vmem, size = 0x800, scoped, tag = 'input window, operand 2, single buffered']
    #allocation8 [shape = 'u8[8192]{0}', space=vmem, size = 0x2000, scoped, tag = 'output window, operand 0, single buffered']
    %8 = vsyncpa [#allocation3], 0
    %9 = vsyncpa [#allocation6], 0
    %10 = vsyncpa [#allocation4], 0
    // Predicated region
    $region2: #{tpu_custom_call.1} parent=1 // pred_check
      _
    $region3: #{tpu_custom_call.1} parent=1 // pred_check_branch
      %12 = sbr.rel (0) target = $region5
    $region4: #{tpu_custom_call.1} parent=1 // pred_region
      %s14 = ssub.s32 256, 256
      %15 = vsyncadd [#allocation3], %s14
      %s16 = sshll.u32 [#allocation2], 4
      %s17 = int_to_ptr.vmem [resolvable:$true] %s16
      %22 = dma.hbm_to_vmem [thread:$0]  %s0, 256, %s17, [#allocation3], 128, 128, 8
    $region5: #{tpu_custom_call.1} parent=1 // pred_fallthru
      _
    // Predicated region
    $region6: #{tpu_custom_call.1} parent=1 // pred_check
      _
    $region7: #{tpu_custom_call.1} parent=1 // pred_check_branch
      %24 = sbr.rel (0) target = $region9
    $region8: #{tpu_custom_call.1} parent=1 // pred_region
      %s26 = ssub.s32 512, 512
      %27 = vsyncadd [#allocation6], %s26
      %s28 = sshll.u32 [#allocation5], 4
      %s29 = int_to_ptr.vmem [resolvable:$true] %s28
      %34 = dma.hbm_to_vmem [thread:$0]  %s1, 512, %s29, [#allocation6], 128, 128, 8
    $region9: #{tpu_custom_call.1} parent=1 // pred_fallthru
      _
    // Predicated region
    $region10: #{tpu_custom_call.1} parent=1 // pred_check
      _
    $region11: #{tpu_custom_call.1} parent=1 // pred_check_branch
      %36 = sbr.rel (0) target = $region13
    $region12: #{tpu_custom_call.1} parent=1 // pred_region
      %s38 = ssub.s32 64, 64
      %39 = vsyncadd [#allocation6], %s38
      %s41 = sshll.u32 [#allocation7], 4
      %s42 = int_to_ptr.vmem [resolvable:$true] %s41
      %44 = dma.hbm_to_vmem [thread:$0]  %s2, 64, %s42, [#allocation6]
    $region13: #{tpu_custom_call.1} parent=1 // pred_fallthru
      _
    // Predicated region
    $region14: #{tpu_custom_call.1} parent=1 // pred_check
      _
    $region15: #{tpu_custom_call.1} parent=1 // pred_check_branch
      %46 = sbr.rel (0) target = $region17
    $region16: #{tpu_custom_call.1} parent=1 // pred_region
      %47 = dma.done [#allocation3], 256
    $region17: #{tpu_custom_call.1} parent=1 // pred_fallthru
      _
    // Predicated region
    $region18: #{tpu_custom_call.1} parent=1 // pred_check
      _
    $region19: #{tpu_custom_call.1} parent=1 // pred_check_branch
      %49 = sbr.rel (0) target = $region21
    $region20: #{tpu_custom_call.1} parent=1 // pred_region
      %50 = dma.done [#allocation6], 512
    $region21: #{tpu_custom_call.1} parent=1 // pred_fallthru
      _
    // Predicated region
    $region22: #{tpu_custom_call.1} parent=1 // pred_check
      _
    $region23: #{tpu_custom_call.1} parent=1 // pred_check_branch
      %52 = sbr.rel (0) target = $region25
    $region24: #{tpu_custom_call.1} parent=1 // pred_region
      %53 = dma.done [#allocation6], 64
    $region25: #{tpu_custom_call.1} parent=1 // pred_fallthru
      _
    %v54 = vld [vmem:[#allocation2] sm:$0xff]
    %v55 = vld [vmem:[#allocation2 + $0x8] sm:$0xff]
    %v56 = vld [vmem:[#allocation5] sm:$0xff]
    %v57 = vld [vmem:[#allocation5 + $0x8] sm:$0xff]
    %v58 = vld [vmem:[#allocation5 + $0x10] sm:$0xff]
    %v59 = vld [vmem:[#allocation5 + $0x18] sm:$0xff]
    %v60 = vld [vmem:[#allocation7] sm:$0x1]
    %v61 = vld [vmem:[#allocation7 + $0x1] sm:$0x1]
    %v62 = vld [vmem:[#allocation7 + $0x2] sm:$0x1]
    %v63 = vlaneseq
    %v64 = vshrl.u32 %v63, 7
    %v65 = vsub.s32 0, %v64
    %v66 = vrot.slane %v60, %v65
    %vm67 = vcmask 261120
    %v69 = vsel %vm67, %v54, 0
    %v72 = vsel %vm67, %v55, 0
    %74 = vmatprep.subr.mxu0 0.0
    %75 = vmatpush1.msra.mxu0 0.0
    %76 = vmatprep.subr.mxu0 0.0
    %77 = vmatpush1.msra.mxu0 0.0
    %78 = vmatprep.subr.mxu0 0.0
    %79 = vmatpush1.msra.mxu0 0.0
    %80 = vmatprep.subr.mxu0 0.0
    %81 = vmatpush1.msra.mxu0 0.0
    %82 = vmatprep.subr.mxu0 0.0
    %83 = vmatpush1.msra.mxu0 0.0
    %84 = vmatprep.subr.mxu0 0.0
    %85 = vmatpush1.msra.mxu0 0.0
    %86 = vmatprep.subr.mxu0 0.0
    %87 = vmatpush1.msra.mxu0 0.0
    %88 = vmatprep.subr.mxu0 0.0
    %89 = vmatpush1.msra.mxu0 0.0
    %90 = vmatprep.subr.mxu0 0.0
    %91 = vmatpush1.msra.mxu0 0.0
    %92 = vmatprep.subr.mxu0 0.0
    %93 = vmatpush1.msra.mxu0 0.0
    %94 = vmatprep.subr.mxu0 0.0
    %95 = vmatpush1.msra.mxu0 0.0
    %96 = vmatprep.subr.mxu0 0.0
    %97 = vmatpush1.msra.mxu0 0.0
    %98 = vmatprep.subr.mxu0 0.0
    %99 = vmatpush1.msra.mxu0 %v59
    %100 = vmatprep.subr.mxu0 0.0
    %101 = vmatpush1.msra.mxu0 %v58
    %102 = vmatprep.subr.mxu0 0.0
    %103 = vmatpush1.msra.mxu0 %v57
    %104 = vmatprep.subr.mxu0 0.0
    %105 = vmatpush1.msra.mxu0 %v56
    %106 = vmatprep.subr.mxu0 0.0
    %107 = vmatpush2.msra.mxu0 0.0
    %108 = vmatprep.subr.mxu0 0.0
    %109 = vmatpush2.msra.mxu0 0.0
    %110 = vmatprep.subr.mxu0 0.0
    %111 = vmatpush2.msra.mxu0 0.0
    %112 = vmatprep.subr.mxu0 0.0
    %113 = vmatpush2.msra.mxu0 0.0
    %114 = vmatprep.subr.mxu0 0.0
    %115 = vmatpush2.msra.mxu0 0.0
    %116 = vmatprep.subr.mxu0 0.0
    %117 = vmatpush2.msra.mxu0 0.0
    %118 = vmatprep.subr.mxu0 0.0
    %119 = vmatpush2.msra.mxu0 0.0
    %120 = vmatprep.subr.mxu0 0.0
    %121 = vmatpush2.msra.mxu0 0.0
    %122 = vmatprep.subr.mxu0 0.0
    %123 = vmatpush2.msra.mxu0 0.0
    %124 = vmatprep.subr.mxu0 0.0
    %125 = vmatpush2.msra.mxu0 0.0
    %126 = vmatprep.subr.mxu0 0.0
    %127 = vmatpush2.msra.mxu0 0.0
    %128 = vmatprep.subr.mxu0 0.0
    %129 = vmatpush2.msra.mxu0 0.0
    %130 = vmatprep.subr.mxu0 0.0
    %131 = vmatpush2.msra.mxu0 0.0
    %132 = vmatprep.subr.mxu0 0.0
    %133 = vmatpush2.msra.mxu0 0.0
    %134 = vmatprep.subr.mxu0 0.0
    %135 = vmatpush2.msra.mxu0 0.0
    %136 = vmatprep.subr.mxu0 0.0
    %137 = vmatpush2.msra.mxu0 0.0
    %138 = vmatprep.mubr.f32.mxu0 0.0
    %139 = vmatmul.mubr.f32.gmra.mxu0 %v69
    %v140 = vpop.f32.mrf.mxu0
    %v141 = vadd.f32 %v66, %v140
    %v142 = vpop.f32.mrf.mxu0
    %143 = vmatprep.mubr.f32.mxu0 0.0
    %144 = vmatmul.mubr.f32.gmra.mxu0 %v72
    %v145 = vpop.f32.mrf.mxu0
    %v146 = vadd.f32 %v66, %v145
    %v147 = vpop.f32.mrf.mxu0
    %148 = vdwg.mxu0
    %v149 = vmax.f32 %v141, 0.0
    %v150 = vmax.f32 %v146, 0.0
    %151 = vadd.xlane.f32.xlu0 %v149
    %v152 = vpop.xlane.xlu0 %151
    %153 = vadd.xlane.f32.xlu0 %v150
    %v154 = vpop.xlane.xlu0 %153
    %v155 = vmul.f32 %v152, 0.015625
    %v156 = vmul.f32 %v154, 0.015625
    %v157 = vmul.f32 %v149, %v149
    %v158 = vmul.f32 %v150, %v150
    %159 = vadd.xlane.f32.xlu0 %v157
    %v160 = vpop.xlane.xlu0 %159
    %161 = vadd.xlane.f32.xlu0 %v158
    %v162 = vpop.xlane.xlu0 %161
    %v163 = vmul.f32 %v160, 0.015625
    %v164 = vmul.f32 %v162, 0.015625
    %v165 = vmul.f32 %v155, %v155
    %v166 = vmul.f32 %v156, %v156
    %v167 = vsub.f32 %v163, %v165
    %v168 = vsub.f32 %v164, %v166
    %v169 = vmax.f32 %v167, 0.0
    %v170 = vmax.f32 %v168, 0.0
    %v171 = vsub.f32 %v149, %v155
    %v172 = vsub.f32 %v150, %v156
    %v173 = vadd.f32 %v169, 1e-05
    %v174 = vadd.f32 %v170, 1e-05
    %v175 = vrsqrt.pop %v173
    %v176 = vrsqrt.pop %v174
    %v177 = vmul.f32 %v171, %v175
    %v178 = vmul.f32 %v172, %v176
    %v179 = vlaneseq
    %v180 = vshrl.u32 %v179, 7
    %v181 = vsub.s32 0, %v180
    %v182 = vrot.slane %v61, %v181
    %v183 = vmul.f32 %v177, %v182
    %v184 = vmul.f32 %v178, %v182
    %v185 = vlaneseq
    %v186 = vshrl.u32 %v185, 7
    %v187 = vsub.s32 0, %v186
    %v188 = vrot.slane %v62, %v187
    %v189 = vadd.f32 %v183, %v188
    %v190 = vadd.f32 %v184, %v188
    %191 = vst [vmem:[#allocation8] sm:$0xff] %v189
    %192 = vst [vmem:[#allocation8 + $0x8] sm:$0xff] %v190
    // Predicated region
    $region26: #{tpu_custom_call.1} parent=1 // pred_check
      _
    $region27: #{tpu_custom_call.1} parent=1 // pred_check_branch
      %194 = sbr.rel (0) target = $region29
    $region28: #{tpu_custom_call.1} parent=1 // pred_region
      %s196 = ssub.s32 256, 256
      %197 = vsyncadd [#allocation4], %s196
      %s198 = sshll.u32 [#allocation8], 4
      %s199 = int_to_ptr.vmem [resolvable:$true] %s198
      %204 = dma.vmem_to_hbm [thread:$0]  %s199, 256, %s3, [#allocation4], 128, 128, 8
    $region29: #{tpu_custom_call.1} parent=1 // pred_fallthru
      _
    // Predicated region
    $region30: #{tpu_custom_call.1} parent=1 // pred_check
      _
    $region31: #{tpu_custom_call.1} parent=1 // pred_check_branch
      %206 = sbr.rel (0) target = $region33
    $region32: #{tpu_custom_call.1} parent=1 // pred_region
      %207 = dma.done [#allocation4], 256
    $region33: #{tpu_custom_call.1} parent=1 // pred_fallthru
      _
    %208 = vsyncpa [#allocation3], 1
    %209 = vsyncpa [#allocation6], 1
    %210 = vsyncpa [#allocation4], 1

</llo_original>
